<compile_context>
chip_gen: v5e
topology: v5e:2x2
jax: 0.10.0
libtpu: 0.0.40
codegen_flags: <defaults>
</compile_context>

<pallas_src>
import jax
import jax.numpy as jnp
import numpy as np
from jax.experimental import pallas as pl
from jax.experimental.pallas import tpu as pltpu

HIDDEN = 32   # hidden_size
VOCAB = 64    # output_size


def decoder_gru_kernel(tok_ref,    # (T, 1)   int32 token ids
                       emb_ref,    # (V, H)   embedding table (resident in VMEM)
                       h0_ref,     # (1, 2H)  initial hidden [fwd | bwd]
                       wih_ref,    # (H, 6H)  W_ih, both directions, [r|z|n] cols
                       whh_ref,    # (2H, 6H) block-diagonal W_hh, both directions
                       bgi_ref,    # (1, 6H)  b_ih (+ b_hh folded for r,z)
                       bghn_ref,   # (1, 2H)  b_hh for the n gate only
                       wout_ref,   # (2H, V)  output Linear weight (pre-transposed)
                       bout_ref,   # (1, V)   output Linear bias
                       logp_ref,   # (T, V)   log-probs (single dense store)
                       hout_ref):  # (1, 2H)  final hidden
    H = HIDDEN
    T, V = logp_ref.shape

    # ---- Prologue (no time dependence) -------------------------------------
    # Embedding gather as a one-hot matmul: (T,V) @ (V,H) on the MXU.
    tok = tok_ref[...]                                             # (T, 1) int32
    lane = jax.lax.broadcasted_iota(jnp.int32, (T, V), 1)          # (T, V)
    onehot = (lane == tok).astype(jnp.float32)                     # (T, V)
    x = jnp.dot(onehot, emb_ref[...],
                preferred_element_type=jnp.float32)                # (T, H)
    x = jnp.maximum(x, 0.0)                                        # torch.relu

    # Input-side gate pre-activations for all steps at once: (T, 6H).
    gi_all = jnp.dot(x, wih_ref[...],
                     preferred_element_type=jnp.float32) + bgi_ref[...]

    whh = whh_ref[...]                                             # (2H, 6H)
    bghn = bghn_ref[...]                                           # (1, 2H)
    h = h0_ref[...]                                                # (1, 2H)

    # ---- Serial recurrence (fully unrolled; T is static & small) -----------
    hs = []
    for t in range(T):
        gi = gi_all[t:t + 1, :]                                    # (1, 6H) static slice
        gh = jnp.dot(h, whh, preferred_element_type=jnp.float32)   # (1, 6H)
        # r and z live in the first, lane-aligned 128-lane block -> one EUP pass.
        rz = jax.nn.sigmoid(gi[:, 0:4 * H] + gh[:, 0:4 * H])       # (1, 4H)
        r = rz[:, 0:2 * H]
        z = rz[:, 2 * H:4 * H]
        # PyTorch GRU: n = tanh(gi_n + r * (gh_n + b_hh_n))
        n = jnp.tanh(gi[:, 4 * H:6 * H] + r * (gh[:, 4 * H:6 * H] + bghn))
        h = (1.0 - z) * n + z * h                                  # (1, 2H)
        hs.append(h)

    # ---- Epilogue: batched projection + log-softmax, single dense store ----
    hcat = jnp.concatenate(hs, axis=0)                             # (T, 2H)
    logits = jnp.dot(hcat, wout_ref[...],
                     preferred_element_type=jnp.float32) + bout_ref[...]  # (T, V)
    m = jnp.max(logits, axis=-1, keepdims=True)
    shifted = logits - m
    lse = jnp.log(jnp.sum(jnp.exp(shifted), axis=-1, keepdims=True))

    logp_ref[...] = shifted - lse
    hout_ref[...] = h


def init_params(key, hidden_size=HIDDEN, output_size=VOCAB):
    """Deterministic parameter init mimicking the shapes in DecoderRNN.__init__."""
    ks = jax.random.split(key, 11)
    k = 1.0 / np.sqrt(hidden_size)
    u = lambda kk, shape: jax.random.uniform(kk, shape, jnp.float32, -k, k)
    return {
        # nn.Embedding(output_size, hidden_size)
        "embedding": jax.random.normal(ks[0], (output_size, hidden_size), jnp.float32),
        # nn.GRU(hidden, hidden, bidirectional=True): per-direction weights
        "w_ih": u(ks[1], (2, 3 * hidden_size, hidden_size)),
        "w_hh": u(ks[2], (2, 3 * hidden_size, hidden_size)),
        "b_ih": u(ks[3], (2, 3 * hidden_size)),
        "b_hh": u(ks[4], (2, 3 * hidden_size)),
        # nn.Linear(2*hidden, output_size)
        "w_out": u(ks[5], (output_size, 2 * hidden_size)),
        "b_out": u(ks[6], (output_size,)),
    }


def prepare_params(params):
    """One-time layout prep (hoisted out of the per-call forward).

    Produces:
      emb      (V, H)      embedding table (kept resident in VMEM)
      w_ih_cat (H, 6H)     column layout [r0 r1 | z0 z1 | n0 n1]
      w_hh_bd  (2H, 6H)    block-diagonal over directions, same column layout
      b_gi     (1, 6H)     b_ih with b_hh folded in for r,z gates
      b_gh_n   (1, 2H)     b_hh for the n gate only (applied inside r * (...))
      w_out_t  (2H, V)     output Linear weight, pre-transposed
      b_out    (1, V)
    """
    H = HIDDEN
    w_ih = params["w_ih"]                                    # (2, 3H, H)
    w_hh = params["w_hh"]                                    # (2, 3H, H)
    b_ih = params["b_ih"]                                    # (2, 3H)
    b_hh = params["b_hh"]                                    # (2, 3H)

    # W_ih: (dir, gate, out, in) -> (in, gate, dir, out) -> (H, 6H)
    wih_g = w_ih.reshape(2, 3, H, H)
    w_ih_cat = jnp.transpose(wih_g, (3, 1, 0, 2)).reshape(H, 6 * H)

    # W_hh block-diagonal: rows 0:H act on h_fwd, rows H:2H act on h_bwd.
    whh_g = w_hh.reshape(2, 3, H, H)                         # (dir, gate, out, in)
    whh_in = jnp.transpose(whh_g, (0, 3, 1, 2))              # (dir, in, gate, out)
    eye2 = jnp.eye(2, dtype=jnp.float32)
    w_hh_bd = (whh_in[:, :, :, None, :] *
               eye2[:, None, None, :, None]).reshape(2 * H, 6 * H)

    # Biases: fold b_ih + b_hh for r,z; keep b_hh_n separate (r * (gh_n + b_hh_n)).
    bi = b_ih.reshape(2, 3, H)
    bh = b_hh.reshape(2, 3, H)
    b_gi_g = jnp.concatenate([bi[:, 0:2, :] + bh[:, 0:2, :], bi[:, 2:3, :]], axis=1)
    b_gi = jnp.transpose(b_gi_g, (1, 0, 2)).reshape(1, 6 * H)
    b_gh_n = bh[:, 2, :].reshape(1, 2 * H)                   # [n_fwd | n_bwd]

    return {
        "emb": params["embedding"],                          # (V, H)
        "w_ih_cat": w_ih_cat,
        "w_hh_bd": w_hh_bd,
        "b_gi": b_gi,
        "b_gh_n": b_gh_n,
        "w_out_t": params["w_out"].T,                        # (2H, V)
        "b_out": params["b_out"][None, :],                   # (1, V)
    }


def decoder_rnn_forward(prepped, tokens, hidden):
    """Fused multi-step DecoderRNN forward (single pallas_call, no step grid).

    tokens : (T,) int32 token ids, consumed sequentially (T=1 reproduces the
             PyTorch module's single-step forward exactly).
    hidden : (2, 1, H) float32 GRU hidden state (fwd / bwd directions).
    returns (log_probs (T, V), new_hidden (2, 1, H))
    """
    H, V = HIDDEN, VOCAB
    T = tokens.shape[0]
    h0 = hidden.reshape(1, 2 * H)                            # lane-dense [fwd | bwd]
    tok2d = tokens.astype(jnp.int32).reshape(T, 1)

    full = lambda shape: pl.BlockSpec(shape, lambda i: (0, 0))

    # Advisory cost hint: microsecond-scale kernel, help XLA schedule around it.
    flops = 2 * T * (V * H + H * 6 * H + 2 * H * 6 * H + 2 * H * V)
    transcendentals = T * (4 * H + 2 * H + V)                # sigmoid + tanh + exp
    bytes_accessed = 4 * (T + V * H + 2 * H + H * 6 * H + 2 * H * 6 * H
                          + 6 * H + 2 * H + 2 * H * V + V + T * V + 2 * H)
    cost = pl.CostEstimate(flops=flops, transcendentals=transcendentals,
                           bytes_accessed=bytes_accessed)

    grid_spec = pltpu.PrefetchScalarGridSpec(
        num_scalar_prefetch=0,
        grid=(1,),
        in_specs=[
            full((T, 1)),                 # token ids
            full((V, H)),                 # embedding table (resident, ~8 KiB)
            full((1, 2 * H)),             # h0
            full((H, 6 * H)),             # W_ih_cat
            full((2 * H, 6 * H)),         # W_hh_bd
            full((1, 6 * H)),             # b_gi
            full((1, 2 * H)),             # b_gh_n
            full((2 * H, V)),             # W_out^T
            full((1, V)),                 # b_out
        ],
        out_specs=(
            full((T, V)),                 # log-probs (single dense store)
            full((1, 2 * H)),             # final hidden
        ),
    )

    logp, h_out = pl.pallas_call(
        decoder_gru_kernel,
        out_shape=(
            jax.ShapeDtypeStruct((T, V), jnp.float32),
            jax.ShapeDtypeStruct((1, 2 * H), jnp.float32),
        ),
        grid_spec=grid_spec,
        cost_estimate=cost,
        compiler_params=pltpu.CompilerParams(
            dimension_semantics=("arbitrary",)),
    )(tok2d, prepped["emb"], h0,
      prepped["w_ih_cat"], prepped["w_hh_bd"], prepped["b_gi"], prepped["b_gh_n"],
      prepped["w_out_t"], prepped["b_out"])

    return logp, h_out.reshape(2, 1, H)


def decoder_rnn_step_reference(params, token, hidden):
    """Pure-JAX single-step reference (mirrors the PyTorch forward)."""
    H = HIDDEN
    x = jnp.maximum(params["embedding"][token][None, :], 0.0)
    h_dirs = []
    for d in range(2):
        h_prev = hidden[d]
        gi = x @ params["w_ih"][d].T + params["b_ih"][d]
        gh = h_prev @ params["w_hh"][d].T + params["b_hh"][d]
        r = jax.nn.sigmoid(gi[:, 0:H] + gh[:, 0:H])
        z = jax.nn.sigmoid(gi[:, H:2 * H] + gh[:, H:2 * H])
        n = jnp.tanh(gi[:, 2 * H:3 * H] + r * gh[:, 2 * H:3 * H])
        h_dirs.append((1.0 - z) * n + z * h_prev)
    out = jnp.concatenate(h_dirs, axis=-1)
    logits = out @ params["w_out"].T + params["b_out"][None, :]
    return jax.nn.log_softmax(logits, axis=1), jnp.stack(h_dirs, axis=0)


def decoder_rnn_reference(params, tokens, hidden):
    """Pure-JAX multi-step reference: apply the single-step forward T times."""
    logps = []
    h = hidden
    for t in range(tokens.shape[0]):
        lp, h = decoder_rnn_step_reference(params, tokens[t], h)
        logps.append(lp)
    return jnp.concatenate(logps, axis=0), h


if __name__ == "__main__":
    key = jax.random.PRNGKey(0)
    pkey, hkey, tkey = jax.random.split(key, 3)
    params = init_params(pkey)
    prepped = prepare_params(params)          # one-time layout prep (hoisted)

    T = 8                                     # decode steps fused into one kernel
    tokens = jax.random.randint(tkey, (T,), 0, VOCAB, dtype=jnp.int32)
    # NOTE: DecoderRNN.initHidden() returns (1,1,H), but a bidirectional GRU
    # actually requires hidden of shape (2,1,H); we use the required shape.
    hidden = jax.random.normal(hkey, (2, 1, HIDDEN), jnp.float32)

    fwd = jax.jit(decoder_rnn_forward)

    # Fused T-step decode (single pallas_call, unrolled in-kernel loop).
    logp, h_new = fwd(prepped, tokens, hidden)
    jax.block_until_ready((logp, h_new))

    ref_logp, ref_h = decoder_rnn_reference(params, tokens, hidden)
    np.testing.assert_allclose(np.asarray(logp), np.asarray(ref_logp),
                               rtol=1e-5, atol=1e-5)
    np.testing.assert_allclose(np.asarray(h_new), np.asarray(ref_h),
                               rtol=1e-5, atol=1e-5)
    assert logp.shape == (T, VOCAB) and h_new.shape == (2, 1, HIDDEN)

    # Single step (T=1) == the PyTorch module's forward(input, hidden).
    logp1, h1 = fwd(prepped, tokens[:1], hidden)
    jax.block_until_ready((logp1, h1))
    ref_logp1, ref_h1 = decoder_rnn_step_reference(params, tokens[0], hidden)
    np.testing.assert_allclose(np.asarray(logp1), np.asarray(ref_logp1),
                               rtol=1e-5, atol=1e-5)
    np.testing.assert_allclose(np.asarray(h1), np.asarray(ref_h1),
                               rtol=1e-5, atol=1e-5)

    print("KERNEL_OK")
</pallas_src>

<mosaic_0001>
module attributes {stable_mosaic.version = 11 : i64} {
  func.func @decoder_gru_kernel(%arg0: i32, %arg1: memref<8x1xi32, #tpu.memory_space<vmem>>, %arg2: memref<64x32xf32, #tpu.memory_space<vmem>>, %arg3: memref<1x64xf32, #tpu.memory_space<vmem>>, %arg4: memref<32x192xf32, #tpu.memory_space<vmem>>, %arg5: memref<64x192xf32, #tpu.memory_space<vmem>>, %arg6: memref<1x192xf32, #tpu.memory_space<vmem>>, %arg7: memref<1x64xf32, #tpu.memory_space<vmem>>, %arg8: memref<64x64xf32, #tpu.memory_space<vmem>>, %arg9: memref<1x64xf32, #tpu.memory_space<vmem>>, %arg10: memref<8x64xf32, #tpu.memory_space<vmem>>, %arg11: memref<1x64xf32, #tpu.memory_space<vmem>>) attributes {dimension_semantics = [#tpu.dimension_semantics<arbitrary>], iteration_bounds = array<i64: 1>, scalar_prefetch = 0 : i64, scratch_operands = 0 : i64, tpu.core_type = #tpu.core_type<tc>, window_params = [{pipeline_mode = #tpu.pipeline_mode<synchronous>, transform_indices = @transform_0, window_bounds = array<i64: 8, 1>}, {pipeline_mode = #tpu.pipeline_mode<synchronous>, transform_indices = @transform_1, window_bounds = array<i64: 64, 32>}, {pipeline_mode = #tpu.pipeline_mode<synchronous>, transform_indices = @transform_2, window_bounds = array<i64: 1, 64>}, {pipeline_mode = #tpu.pipeline_mode<synchronous>, transform_indices = @transform_3, window_bounds = array<i64: 32, 192>}, {pipeline_mode = #tpu.pipeline_mode<synchronous>, transform_indices = @transform_4, window_bounds = array<i64: 64, 192>}, {pipeline_mode = #tpu.pipeline_mode<synchronous>, transform_indices = @transform_5, window_bounds = array<i64: 1, 192>}, {pipeline_mode = #tpu.pipeline_mode<synchronous>, transform_indices = @transform_6, window_bounds = array<i64: 1, 64>}, {pipeline_mode = #tpu.pipeline_mode<synchronous>, transform_indices = @transform_7, window_bounds = array<i64: 64, 64>}, {pipeline_mode = #tpu.pipeline_mode<synchronous>, transform_indices = @transform_8, window_bounds = array<i64: 1, 64>}, {pipeline_mode = #tpu.pipeline_mode<synchronous>, transform_indices = @transform_9, window_bounds = array<i64: 8, 64>}, {pipeline_mode = #tpu.pipeline_mode<synchronous>, transform_indices = @transform_10, window_bounds = array<i64: 1, 64>}]} {
    %c0 = arith.constant 0 : index
    %c0_0 = arith.constant 0 : index
    %0 = vector.load %arg1[%c0, %c0_0] : memref<8x1xi32, #tpu.memory_space<vmem>>, vector<8x1xi32>
    %1 = tpu.iota {dimensions = array<i32: 1>} : vector<8x64xi32>
    %2 = vector.broadcast %0 : vector<8x1xi32> to vector<8x64xi32>
    %3 = arith.cmpi eq, %1, %2 : vector<8x64xi32>
    %4 = arith.extui %3 : vector<8x64xi1> to vector<8x64xi32>
    %5 = arith.sitofp %4 : vector<8x64xi32> to vector<8x64xf32>
    %c0_1 = arith.constant 0 : index
    %c0_2 = arith.constant 0 : index
    %6 = vector.load %arg2[%c0_1, %c0_2] : memref<64x32xf32, #tpu.memory_space<vmem>>, vector<64x32xf32>
    %cst = arith.constant dense<0.000000e+00> : vector<8x32xf32>
    %7 = tpu.matmul %5, %6, %cst {dimension_numbers = #tpu.dot_dimension_numbers<[1], [0], [0], [1], [0, 0, 1, 1], [], []>} : vector<8x64xf32>, vector<64x32xf32>, vector<8x32xf32> -> vector<8x32xf32>
    %cst_3 = arith.constant 0.000000e+00 : f32
    %8 = vector.broadcast %cst_3 : f32 to vector<8x32xf32>
    %9 = arith.maximumf %7, %8 : vector<8x32xf32>
    %c0_4 = arith.constant 0 : index
    %c0_5 = arith.constant 0 : index
    %10 = vector.load %arg4[%c0_4, %c0_5] : memref<32x192xf32, #tpu.memory_space<vmem>>, vector<32x192xf32>
    %cst_6 = arith.constant dense<0.000000e+00> : vector<8x192xf32>
    %11 = tpu.matmul %9, %10, %cst_6 {dimension_numbers = #tpu.dot_dimension_numbers<[1], [0], [0], [1], [0, 0, 1, 1], [], []>} : vector<8x32xf32>, vector<32x192xf32>, vector<8x192xf32> -> vector<8x192xf32>
    %c0_7 = arith.constant 0 : index
    %c0_8 = arith.constant 0 : index
    %12 = vector.load %arg6[%c0_7, %c0_8] : memref<1x192xf32, #tpu.memory_space<vmem>>, vector<1x192xf32>
    %13 = vector.broadcast %12 : vector<1x192xf32> to vector<8x192xf32>
    %14 = arith.addf %11, %13 : vector<8x192xf32>
    %c0_9 = arith.constant 0 : index
    %c0_10 = arith.constant 0 : index
    %15 = vector.load %arg5[%c0_9, %c0_10] : memref<64x192xf32, #tpu.memory_space<vmem>>, vector<64x192xf32>
    %c0_11 = arith.constant 0 : index
    %c0_12 = arith.constant 0 : index
    %16 = vector.load %arg7[%c0_11, %c0_12] : memref<1x64xf32, #tpu.memory_space<vmem>>, vector<1x64xf32>
    %c0_13 = arith.constant 0 : index
    %c0_14 = arith.constant 0 : index
    %17 = vector.load %arg3[%c0_13, %c0_14] : memref<1x64xf32, #tpu.memory_space<vmem>>, vector<1x64xf32>
    %18 = vector.extract_strided_slice %14 {offsets = [0, 0], sizes = [1, 192], strides = [1, 1]} : vector<8x192xf32> to vector<1x192xf32>
    %cst_15 = arith.constant dense<0.000000e+00> : vector<1x192xf32>
    %19 = tpu.matmul %17, %15, %cst_15 {dimension_numbers = #tpu.dot_dimension_numbers<[1], [0], [0], [1], [0, 0, 1, 1], [], []>} : vector<1x64xf32>, vector<64x192xf32>, vector<1x192xf32> -> vector<1x192xf32>
    %20 = vector.extract_strided_slice %18 {offsets = [0, 0], sizes = [1, 128], strides = [1, 1]} : vector<1x192xf32> to vector<1x128xf32>
    %21 = vector.extract_strided_slice %19 {offsets = [0, 0], sizes = [1, 128], strides = [1, 1]} : vector<1x192xf32> to vector<1x128xf32>
    %22 = arith.addf %20, %21 : vector<1x128xf32>
    %23 = arith.negf %22 : vector<1x128xf32>
    %24 = math.exp %23 : vector<1x128xf32>
    %cst_16 = arith.constant 1.000000e+00 : f32
    %25 = vector.broadcast %cst_16 : f32 to vector<1x128xf32>
    %26 = arith.addf %25, %24 : vector<1x128xf32>
    %27 = arith.divf %25, %26 : vector<1x128xf32>
    %28 = vector.extract_strided_slice %27 {offsets = [0, 0], sizes = [1, 64], strides = [1, 1]} : vector<1x128xf32> to vector<1x64xf32>
    %29 = vector.extract_strided_slice %27 {offsets = [0, 64], sizes = [1, 64], strides = [1, 1]} : vector<1x128xf32> to vector<1x64xf32>
    %30 = vector.extract_strided_slice %18 {offsets = [0, 128], sizes = [1, 64], strides = [1, 1]} : vector<1x192xf32> to vector<1x64xf32>
    %31 = vector.extract_strided_slice %19 {offsets = [0, 128], sizes = [1, 64], strides = [1, 1]} : vector<1x192xf32> to vector<1x64xf32>
    %32 = arith.addf %31, %16 : vector<1x64xf32>
    %33 = arith.mulf %28, %32 : vector<1x64xf32>
    %34 = arith.addf %30, %33 : vector<1x64xf32>
    %35 = math.tanh %34 : vector<1x64xf32>
    %cst_17 = arith.constant 1.000000e+00 : f32
    %36 = vector.broadcast %cst_17 : f32 to vector<1x64xf32>
    %37 = arith.subf %36, %29 : vector<1x64xf32>
    %38 = arith.mulf %37, %35 : vector<1x64xf32>
    %39 = arith.mulf %29, %17 : vector<1x64xf32>
    %40 = arith.addf %38, %39 : vector<1x64xf32>
    %41 = vector.extract_strided_slice %14 {offsets = [1, 0], sizes = [1, 192], strides = [1, 1]} : vector<8x192xf32> to vector<1x192xf32>
    %cst_18 = arith.constant dense<0.000000e+00> : vector<1x192xf32>
    %42 = tpu.matmul %40, %15, %cst_18 {dimension_numbers = #tpu.dot_dimension_numbers<[1], [0], [0], [1], [0, 0, 1, 1], [], []>} : vector<1x64xf32>, vector<64x192xf32>, vector<1x192xf32> -> vector<1x192xf32>
    %43 = vector.extract_strided_slice %41 {offsets = [0, 0], sizes = [1, 128], strides = [1, 1]} : vector<1x192xf32> to vector<1x128xf32>
    %44 = vector.extract_strided_slice %42 {offsets = [0, 0], sizes = [1, 128], strides = [1, 1]} : vector<1x192xf32> to vector<1x128xf32>
    %45 = arith.addf %43, %44 : vector<1x128xf32>
    %46 = arith.negf %45 : vector<1x128xf32>
    %47 = math.exp %46 : vector<1x128xf32>
    %cst_19 = arith.constant 1.000000e+00 : f32
    %48 = vector.broadcast %cst_19 : f32 to vector<1x128xf32>
    %49 = arith.addf %48, %47 : vector<1x128xf32>
    %50 = arith.divf %48, %49 : vector<1x128xf32>
    %51 = vector.extract_strided_slice %50 {offsets = [0, 0], sizes = [1, 64], strides = [1, 1]} : vector<1x128xf32> to vector<1x64xf32>
    %52 = vector.extract_strided_slice %50 {offsets = [0, 64], sizes = [1, 64], strides = [1, 1]} : vector<1x128xf32> to vector<1x64xf32>
    %53 = vector.extract_strided_slice %41 {offsets = [0, 128], sizes = [1, 64], strides = [1, 1]} : vector<1x192xf32> to vector<1x64xf32>
    %54 = vector.extract_strided_slice %42 {offsets = [0, 128], sizes = [1, 64], strides = [1, 1]} : vector<1x192xf32> to vector<1x64xf32>
    %55 = arith.addf %54, %16 : vector<1x64xf32>
    %56 = arith.mulf %51, %55 : vector<1x64xf32>
    %57 = arith.addf %53, %56 : vector<1x64xf32>
    %58 = math.tanh %57 : vector<1x64xf32>
    %cst_20 = arith.constant 1.000000e+00 : f32
    %59 = vector.broadcast %cst_20 : f32 to vector<1x64xf32>
    %60 = arith.subf %59, %52 : vector<1x64xf32>
    %61 = arith.mulf %60, %58 : vector<1x64xf32>
    %62 = arith.mulf %52, %40 : vector<1x64xf32>
    %63 = arith.addf %61, %62 : vector<1x64xf32>
    %64 = vector.extract_strided_slice %14 {offsets = [2, 0], sizes = [1, 192], strides = [1, 1]} : vector<8x192xf32> to vector<1x192xf32>
    %cst_21 = arith.constant dense<0.000000e+00> : vector<1x192xf32>
    %65 = tpu.matmul %63, %15, %cst_21 {dimension_numbers = #tpu.dot_dimension_numbers<[1], [0], [0], [1], [0, 0, 1, 1], [], []>} : vector<1x64xf32>, vector<64x192xf32>, vector<1x192xf32> -> vector<1x192xf32>
    %66 = vector.extract_strided_slice %64 {offsets = [0, 0], sizes = [1, 128], strides = [1, 1]} : vector<1x192xf32> to vector<1x128xf32>
    %67 = vector.extract_strided_slice %65 {offsets = [0, 0], sizes = [1, 128], strides = [1, 1]} : vector<1x192xf32> to vector<1x128xf32>
    %68 = arith.addf %66, %67 : vector<1x128xf32>
    %69 = arith.negf %68 : vector<1x128xf32>
    %70 = math.exp %69 : vector<1x128xf32>
    %cst_22 = arith.constant 1.000000e+00 : f32
    %71 = vector.broadcast %cst_22 : f32 to vector<1x128xf32>
    %72 = arith.addf %71, %70 : vector<1x128xf32>
    %73 = arith.divf %71, %72 : vector<1x128xf32>
    %74 = vector.extract_strided_slice %73 {offsets = [0, 0], sizes = [1, 64], strides = [1, 1]} : vector<1x128xf32> to vector<1x64xf32>
    %75 = vector.extract_strided_slice %73 {offsets = [0, 64], sizes = [1, 64], strides = [1, 1]} : vector<1x128xf32> to vector<1x64xf32>
    %76 = vector.extract_strided_slice %64 {offsets = [0, 128], sizes = [1, 64], strides = [1, 1]} : vector<1x192xf32> to vector<1x64xf32>
    %77 = vector.extract_strided_slice %65 {offsets = [0, 128], sizes = [1, 64], strides = [1, 1]} : vector<1x192xf32> to vector<1x64xf32>
    %78 = arith.addf %77, %16 : vector<1x64xf32>
    %79 = arith.mulf %74, %78 : vector<1x64xf32>
    %80 = arith.addf %76, %79 : vector<1x64xf32>
    %81 = math.tanh %80 : vector<1x64xf32>
    %cst_23 = arith.constant 1.000000e+00 : f32
    %82 = vector.broadcast %cst_23 : f32 to vector<1x64xf32>
    %83 = arith.subf %82, %75 : vector<1x64xf32>
    %84 = arith.mulf %83, %81 : vector<1x64xf32>
    %85 = arith.mulf %75, %63 : vector<1x64xf32>
    %86 = arith.addf %84, %85 : vector<1x64xf32>
    %87 = vector.extract_strided_slice %14 {offsets = [3, 0], sizes = [1, 192], strides = [1, 1]} : vector<8x192xf32> to vector<1x192xf32>
    %cst_24 = arith.constant dense<0.000000e+00> : vector<1x192xf32>
    %88 = tpu.matmul %86, %15, %cst_24 {dimension_numbers = #tpu.dot_dimension_numbers<[1], [0], [0], [1], [0, 0, 1, 1], [], []>} : vector<1x64xf32>, vector<64x192xf32>, vector<1x192xf32> -> vector<1x192xf32>
    %89 = vector.extract_strided_slice %87 {offsets = [0, 0], sizes = [1, 128], strides = [1, 1]} : vector<1x192xf32> to vector<1x128xf32>
    %90 = vector.extract_strided_slice %88 {offsets = [0, 0], sizes = [1, 128], strides = [1, 1]} : vector<1x192xf32> to vector<1x128xf32>
    %91 = arith.addf %89, %90 : vector<1x128xf32>
    %92 = arith.negf %91 : vector<1x128xf32>
    %93 = math.exp %92 : vector<1x128xf32>
    %cst_25 = arith.constant 1.000000e+00 : f32
    %94 = vector.broadcast %cst_25 : f32 to vector<1x128xf32>
    %95 = arith.addf %94, %93 : vector<1x128xf32>
    %96 = arith.divf %94, %95 : vector<1x128xf32>
    %97 = vector.extract_strided_slice %96 {offsets = [0, 0], sizes = [1, 64], strides = [1, 1]} : vector<1x128xf32> to vector<1x64xf32>
    %98 = vector.extract_strided_slice %96 {offsets = [0, 64], sizes = [1, 64], strides = [1, 1]} : vector<1x128xf32> to vector<1x64xf32>
    %99 = vector.extract_strided_slice %87 {offsets = [0, 128], sizes = [1, 64], strides = [1, 1]} : vector<1x192xf32> to vector<1x64xf32>
    %100 = vector.extract_strided_slice %88 {offsets = [0, 128], sizes = [1, 64], strides = [1, 1]} : vector<1x192xf32> to vector<1x64xf32>
    %101 = arith.addf %100, %16 : vector<1x64xf32>
    %102 = arith.mulf %97, %101 : vector<1x64xf32>
    %103 = arith.addf %99, %102 : vector<1x64xf32>
    %104 = math.tanh %103 : vector<1x64xf32>
    %cst_26 = arith.constant 1.000000e+00 : f32
    %105 = vector.broadcast %cst_26 : f32 to vector<1x64xf32>
    %106 = arith.subf %105, %98 : vector<1x64xf32>
    %107 = arith.mulf %106, %104 : vector<1x64xf32>
    %108 = arith.mulf %98, %86 : vector<1x64xf32>
    %109 = arith.addf %107, %108 : vector<1x64xf32>
    %110 = vector.extract_strided_slice %14 {offsets = [4, 0], sizes = [1, 192], strides = [1, 1]} : vector<8x192xf32> to vector<1x192xf32>
    %cst_27 = arith.constant dense<0.000000e+00> : vector<1x192xf32>
    %111 = tpu.matmul %109, %15, %cst_27 {dimension_numbers = #tpu.dot_dimension_numbers<[1], [0], [0], [1], [0, 0, 1, 1], [], []>} : vector<1x64xf32>, vector<64x192xf32>, vector<1x192xf32> -> vector<1x192xf32>
    %112 = vector.extract_strided_slice %110 {offsets = [0, 0], sizes = [1, 128], strides = [1, 1]} : vector<1x192xf32> to vector<1x128xf32>
    %113 = vector.extract_strided_slice %111 {offsets = [0, 0], sizes = [1, 128], strides = [1, 1]} : vector<1x192xf32> to vector<1x128xf32>
    %114 = arith.addf %112, %113 : vector<1x128xf32>
    %115 = arith.negf %114 : vector<1x128xf32>
    %116 = math.exp %115 : vector<1x128xf32>
    %cst_28 = arith.constant 1.000000e+00 : f32
    %117 = vector.broadcast %cst_28 : f32 to vector<1x128xf32>
    %118 = arith.addf %117, %116 : vector<1x128xf32>
    %119 = arith.divf %117, %118 : vector<1x128xf32>
    %120 = vector.extract_strided_slice %119 {offsets = [0, 0], sizes = [1, 64], strides = [1, 1]} : vector<1x128xf32> to vector<1x64xf32>
    %121 = vector.extract_strided_slice %119 {offsets = [0, 64], sizes = [1, 64], strides = [1, 1]} : vector<1x128xf32> to vector<1x64xf32>
    %122 = vector.extract_strided_slice %110 {offsets = [0, 128], sizes = [1, 64], strides = [1, 1]} : vector<1x192xf32> to vector<1x64xf32>
    %123 = vector.extract_strided_slice %111 {offsets = [0, 128], sizes = [1, 64], strides = [1, 1]} : vector<1x192xf32> to vector<1x64xf32>
    %124 = arith.addf %123, %16 : vector<1x64xf32>
    %125 = arith.mulf %120, %124 : vector<1x64xf32>
    %126 = arith.addf %122, %125 : vector<1x64xf32>
    %127 = math.tanh %126 : vector<1x64xf32>
    %cst_29 = arith.constant 1.000000e+00 : f32
    %128 = vector.broadcast %cst_29 : f32 to vector<1x64xf32>
    %129 = arith.subf %128, %121 : vector<1x64xf32>
    %130 = arith.mulf %129, %127 : vector<1x64xf32>
    %131 = arith.mulf %121, %109 : vector<1x64xf32>
    %132 = arith.addf %130, %131 : vector<1x64xf32>
    %133 = vector.extract_strided_slice %14 {offsets = [5, 0], sizes = [1, 192], strides = [1, 1]} : vector<8x192xf32> to vector<1x192xf32>
    %cst_30 = arith.constant dense<0.000000e+00> : vector<1x192xf32>
    %134 = tpu.matmul %132, %15, %cst_30 {dimension_numbers = #tpu.dot_dimension_numbers<[1], [0], [0], [1], [0, 0, 1, 1], [], []>} : vector<1x64xf32>, vector<64x192xf32>, vector<1x192xf32> -> vector<1x192xf32>
    %135 = vector.extract_strided_slice %133 {offsets = [0, 0], sizes = [1, 128], strides = [1, 1]} : vector<1x192xf32> to vector<1x128xf32>
    %136 = vector.extract_strided_slice %134 {offsets = [0, 0], sizes = [1, 128], strides = [1, 1]} : vector<1x192xf32> to vector<1x128xf32>
    %137 = arith.addf %135, %136 : vector<1x128xf32>
    %138 = arith.negf %137 : vector<1x128xf32>
    %139 = math.exp %138 : vector<1x128xf32>
    %cst_31 = arith.constant 1.000000e+00 : f32
    %140 = vector.broadcast %cst_31 : f32 to vector<1x128xf32>
    %141 = arith.addf %140, %139 : vector<1x128xf32>
    %142 = arith.divf %140, %141 : vector<1x128xf32>
    %143 = vector.extract_strided_slice %142 {offsets = [0, 0], sizes = [1, 64], strides = [1, 1]} : vector<1x128xf32> to vector<1x64xf32>
    %144 = vector.extract_strided_slice %142 {offsets = [0, 64], sizes = [1, 64], strides = [1, 1]} : vector<1x128xf32> to vector<1x64xf32>
    %145 = vector.extract_strided_slice %133 {offsets = [0, 128], sizes = [1, 64], strides = [1, 1]} : vector<1x192xf32> to vector<1x64xf32>
    %146 = vector.extract_strided_slice %134 {offsets = [0, 128], sizes = [1, 64], strides = [1, 1]} : vector<1x192xf32> to vector<1x64xf32>
    %147 = arith.addf %146, %16 : vector<1x64xf32>
    %148 = arith.mulf %143, %147 : vector<1x64xf32>
    %149 = arith.addf %145, %148 : vector<1x64xf32>
    %150 = math.tanh %149 : vector<1x64xf32>
    %cst_32 = arith.constant 1.000000e+00 : f32
    %151 = vector.broadcast %cst_32 : f32 to vector<1x64xf32>
    %152 = arith.subf %151, %144 : vector<1x64xf32>
    %153 = arith.mulf %152, %150 : vector<1x64xf32>
    %154 = arith.mulf %144, %132 : vector<1x64xf32>
    %155 = arith.addf %153, %154 : vector<1x64xf32>
    %156 = vector.extract_strided_slice %14 {offsets = [6, 0], sizes = [1, 192], strides = [1, 1]} : vector<8x192xf32> to vector<1x192xf32>
    %cst_33 = arith.constant dense<0.000000e+00> : vector<1x192xf32>
    %157 = tpu.matmul %155, %15, %cst_33 {dimension_numbers = #tpu.dot_dimension_numbers<[1], [0], [0], [1], [0, 0, 1, 1], [], []>} : vector<1x64xf32>, vector<64x192xf32>, vector<1x192xf32> -> vector<1x192xf32>
    %158 = vector.extract_strided_slice %156 {offsets = [0, 0], sizes = [1, 128], strides = [1, 1]} : vector<1x192xf32> to vector<1x128xf32>
    %159 = vector.extract_strided_slice %157 {offsets = [0, 0], sizes = [1, 128], strides = [1, 1]} : vector<1x192xf32> to vector<1x128xf32>
    %160 = arith.addf %158, %159 : vector<1x128xf32>
    %161 = arith.negf %160 : vector<1x128xf32>
    %162 = math.exp %161 : vector<1x128xf32>
    %cst_34 = arith.constant 1.000000e+00 : f32
    %163 = vector.broadcast %cst_34 : f32 to vector<1x128xf32>
    %164 = arith.addf %163, %162 : vector<1x128xf32>
    %165 = arith.divf %163, %164 : vector<1x128xf32>
    %166 = vector.extract_strided_slice %165 {offsets = [0, 0], sizes = [1, 64], strides = [1, 1]} : vector<1x128xf32> to vector<1x64xf32>
    %167 = vector.extract_strided_slice %165 {offsets = [0, 64], sizes = [1, 64], strides = [1, 1]} : vector<1x128xf32> to vector<1x64xf32>
    %168 = vector.extract_strided_slice %156 {offsets = [0, 128], sizes = [1, 64], strides = [1, 1]} : vector<1x192xf32> to vector<1x64xf32>
    %169 = vector.extract_strided_slice %157 {offsets = [0, 128], sizes = [1, 64], strides = [1, 1]} : vector<1x192xf32> to vector<1x64xf32>
    %170 = arith.addf %169, %16 : vector<1x64xf32>
    %171 = arith.mulf %166, %170 : vector<1x64xf32>
    %172 = arith.addf %168, %171 : vector<1x64xf32>
    %173 = math.tanh %172 : vector<1x64xf32>
    %cst_35 = arith.constant 1.000000e+00 : f32
    %174 = vector.broadcast %cst_35 : f32 to vector<1x64xf32>
    %175 = arith.subf %174, %167 : vector<1x64xf32>
    %176 = arith.mulf %175, %173 : vector<1x64xf32>
    %177 = arith.mulf %167, %155 : vector<1x64xf32>
    %178 = arith.addf %176, %177 : vector<1x64xf32>
    %179 = vector.extract_strided_slice %14 {offsets = [7, 0], sizes = [1, 192], strides = [1, 1]} : vector<8x192xf32> to vector<1x192xf32>
    %cst_36 = arith.constant dense<0.000000e+00> : vector<1x192xf32>
    %180 = tpu.matmul %178, %15, %cst_36 {dimension_numbers = #tpu.dot_dimension_numbers<[1], [0], [0], [1], [0, 0, 1, 1], [], []>} : vector<1x64xf32>, vector<64x192xf32>, vector<1x192xf32> -> vector<1x192xf32>
    %181 = vector.extract_strided_slice %179 {offsets = [0, 0], sizes = [1, 128], strides = [1, 1]} : vector<1x192xf32> to vector<1x128xf32>
    %182 = vector.extract_strided_slice %180 {offsets = [0, 0], sizes = [1, 128], strides = [1, 1]} : vector<1x192xf32> to vector<1x128xf32>
    %183 = arith.addf %181, %182 : vector<1x128xf32>
    %184 = arith.negf %183 : vector<1x128xf32>
    %185 = math.exp %184 : vector<1x128xf32>
    %cst_37 = arith.constant 1.000000e+00 : f32
    %186 = vector.broadcast %cst_37 : f32 to vector<1x128xf32>
    %187 = arith.addf %186, %185 : vector<1x128xf32>
    %188 = arith.divf %186, %187 : vector<1x128xf32>
    %189 = vector.extract_strided_slice %188 {offsets = [0, 0], sizes = [1, 64], strides = [1, 1]} : vector<1x128xf32> to vector<1x64xf32>
    %190 = vector.extract_strided_slice %188 {offsets = [0, 64], sizes = [1, 64], strides = [1, 1]} : vector<1x128xf32> to vector<1x64xf32>
    %191 = vector.extract_strided_slice %179 {offsets = [0, 128], sizes = [1, 64], strides = [1, 1]} : vector<1x192xf32> to vector<1x64xf32>
    %192 = vector.extract_strided_slice %180 {offsets = [0, 128], sizes = [1, 64], strides = [1, 1]} : vector<1x192xf32> to vector<1x64xf32>
    %193 = arith.addf %192, %16 : vector<1x64xf32>
    %194 = arith.mulf %189, %193 : vector<1x64xf32>
    %195 = arith.addf %191, %194 : vector<1x64xf32>
    %196 = math.tanh %195 : vector<1x64xf32>
    %cst_38 = arith.constant 1.000000e+00 : f32
    %197 = vector.broadcast %cst_38 : f32 to vector<1x64xf32>
    %198 = arith.subf %197, %190 : vector<1x64xf32>
    %199 = arith.mulf %198, %196 : vector<1x64xf32>
    %200 = arith.mulf %190, %178 : vector<1x64xf32>
    %201 = arith.addf %199, %200 : vector<1x64xf32>
    %202 = tpu.concatenate %40, %63, %86, %109, %132, %155, %178, %201 in 0 : vector<1x64xf32>, vector<1x64xf32>, vector<1x64xf32>, vector<1x64xf32>, vector<1x64xf32>, vector<1x64xf32>, vector<1x64xf32>, vector<1x64xf32> -> vector<8x64xf32>
    %c0_39 = arith.constant 0 : index
    %c0_40 = arith.constant 0 : index
    %203 = vector.load %arg8[%c0_39, %c0_40] : memref<64x64xf32, #tpu.memory_space<vmem>>, vector<64x64xf32>
    %cst_41 = arith.constant dense<0.000000e+00> : vector<8x64xf32>
    %204 = tpu.matmul %202, %203, %cst_41 {dimension_numbers = #tpu.dot_dimension_numbers<[1], [0], [0], [1], [0, 0, 1, 1], [], []>} : vector<8x64xf32>, vector<64x64xf32>, vector<8x64xf32> -> vector<8x64xf32>
    %c0_42 = arith.constant 0 : index
    %c0_43 = arith.constant 0 : index
    %205 = vector.load %arg9[%c0_42, %c0_43] : memref<1x64xf32, #tpu.memory_space<vmem>>, vector<1x64xf32>
    %206 = vector.broadcast %205 : vector<1x64xf32> to vector<8x64xf32>
    %207 = arith.addf %204, %206 : vector<8x64xf32>
    %cst_44 = arith.constant dense<0xFF800000> : vector<8xf32>
    %208 = vector.multi_reduction <maximumf>, %207, %cst_44 [1] : vector<8x64xf32> to vector<8xf32>
    %209 = vector.shape_cast %208 : vector<8xf32> to vector<8x1xf32>
    %210 = vector.broadcast %209 : vector<8x1xf32> to vector<8x64xf32>
    %211 = arith.subf %207, %210 : vector<8x64xf32>
    %212 = math.exp %211 : vector<8x64xf32>
    %cst_45 = arith.constant dense<0.000000e+00> : vector<8xf32>
    %213 = vector.multi_reduction <add>, %212, %cst_45 [1] : vector<8x64xf32> to vector<8xf32>
    %214 = vector.shape_cast %213 : vector<8xf32> to vector<8x1xf32>
    %215 = math.log %214 : vector<8x1xf32>
    %216 = vector.broadcast %215 : vector<8x1xf32> to vector<8x64xf32>
    %217 = arith.subf %211, %216 : vector<8x64xf32>
    %c0_46 = arith.constant 0 : index
    %c0_47 = arith.constant 0 : index
    %218 = vector.load %arg10[%c0_46, %c0_47] : memref<8x64xf32, #tpu.memory_space<vmem>>, vector<8x64xf32>
    tpu.vector_store %arg10[%c0_46, %c0_47], %217 {strides = array<i32>} : memref<8x64xf32, #tpu.memory_space<vmem>>, vector<8x64xf32>,
    %c0_48 = arith.constant 0 : index
    %c0_49 = arith.constant 0 : index
    %219 = vector.load %arg11[%c0_48, %c0_49] : memref<1x64xf32, #tpu.memory_space<vmem>>, vector<1x64xf32>
    tpu.vector_store %arg11[%c0_48, %c0_49], %201 {strides = array<i32>} : memref<1x64xf32, #tpu.memory_space<vmem>>, vector<1x64xf32>,
    return
  }
  func.func @transform_0(%arg0: i32) -> (i32, i32) {
    %c0_i32 = arith.constant 0 : i32
    %c0_i32_0 = arith.constant 0 : i32
    %c0_i32_1 = arith.constant 0 : i32
    return %c0_i32, %c0_i32_0 : i32, i32
  }
  func.func @transform_1(%arg0: i32) -> (i32, i32) {
    %c0_i32 = arith.constant 0 : i32
    %c0_i32_0 = arith.constant 0 : i32
    %c0_i32_1 = arith.constant 0 : i32
    return %c0_i32, %c0_i32_0 : i32, i32
  }
  func.func @transform_2(%arg0: i32) -> (i32, i32) {
    %c0_i32 = arith.constant 0 : i32
    %c0_i32_0 = arith.constant 0 : i32
    %c0_i32_1 = arith.constant 0 : i32
    return %c0_i32, %c0_i32_0 : i32, i32
  }
  func.func @transform_3(%arg0: i32) -> (i32, i32) {
    %c0_i32 = arith.constant 0 : i32
    %c0_i32_0 = arith.constant 0 : i32
    %c0_i32_1 = arith.constant 0 : i32
    return %c0_i32, %c0_i32_0 : i32, i32
  }
  func.func @transform_4(%arg0: i32) -> (i32, i32) {
    %c0_i32 = arith.constant 0 : i32
    %c0_i32_0 = arith.constant 0 : i32
    %c0_i32_1 = arith.constant 0 : i32
    return %c0_i32, %c0_i32_0 : i32, i32
  }
  func.func @transform_5(%arg0: i32) -> (i32, i32) {
    %c0_i32 = arith.constant 0 : i32
    %c0_i32_0 = arith.constant 0 : i32
    %c0_i32_1 = arith.constant 0 : i32
    return %c0_i32, %c0_i32_0 : i32, i32
  }
  func.func @transform_6(%arg0: i32) -> (i32, i32) {
    %c0_i32 = arith.constant 0 : i32
    %c0_i32_0 = arith.constant 0 : i32
    %c0_i32_1 = arith.constant 0 : i32
    return %c0_i32, %c0_i32_0 : i32, i32
  }
  func.func @transform_7(%arg0: i32) -> (i32, i32) {
    %c0_i32 = arith.constant 0 : i32
    %c0_i32_0 = arith.constant 0 : i32
    %c0_i32_1 = arith.constant 0 : i32
    return %c0_i32, %c0_i32_0 : i32, i32
  }
  func.func @transform_8(%arg0: i32) -> (i32, i32) {
    %c0_i32 = arith.constant 0 : i32
    %c0_i32_0 = arith.constant 0 : i32
    %c0_i32_1 = arith.constant 0 : i32
    return %c0_i32, %c0_i32_0 : i32, i32
  }
  func.func @transform_9(%arg0: i32) -> (i32, i32) {
    %c0_i32 = arith.constant 0 : i32
    %c0_i32_0 = arith.constant 0 : i32
    %c0_i32_1 = arith.constant 0 : i32
    return %c0_i32, %c0_i32_0 : i32, i32
  }
  func.func @transform_10(%arg0: i32) -> (i32, i32) {
    %c0_i32 = arith.constant 0 : i32
    %c0_i32_0 = arith.constant 0 : i32
    %c0_i32_1 = arith.constant 0 : i32
    return %c0_i32, %c0_i32_0 : i32, i32
  }
}

</mosaic_0001>

<llo_original>
// kernel: decoder_rnn_forward.1
$region0: #{decoder_rnn_forward.1}
  #allocation0 [shape = 'u32[]', space=smem, size = 0x4, offset = 0x4, fixed_abs, tag = 'smem constant byte address 0x4 - core index']
  #allocation1 [shape = 'u32[72,128]{1,0:T(1,128)}', space=vmem, size = 0x9000, scoped, tag = 'internal scratch']
  %s0 = inlined_call_operand.vmem [shape: s32[8,1], index: 0, kind: input, shape index: {}]
  %s1 = inlined_call_operand.vmem [shape: f32[64,32], index: 1, kind: input, shape index: {}]
  %s2 = inlined_call_operand.vmem [shape: f32[1,64], index: 2, kind: input, shape index: {}]
  %s3 = inlined_call_operand.vmem [shape: f32[32,192], index: 3, kind: input, shape index: {}]
  %s4 = inlined_call_operand.hbm [shape: f32[64,192], index: 4, kind: input, shape index: {}]
  %s5 = inlined_call_operand.vmem [shape: f32[1,192], index: 5, kind: input, shape index: {}]
  %s6 = inlined_call_operand.vmem [shape: f32[1,64], index: 6, kind: input, shape index: {}]
  %s7 = inlined_call_operand.hbm [shape: f32[64,64], index: 7, kind: input, shape index: {}]
  %s8 = inlined_call_operand.vmem [shape: f32[1,64], index: 8, kind: input, shape index: {}]
  %s9 = inlined_call_operand.hbm [shape: f32[8,64], index: 9, kind: output, shape index: {0}]
  %s10 = inlined_call_operand.vmem [shape: f32[1,64], index: 10, kind: output, shape index: {1}]
  %11 = xla_tuple %s9, %s10
  %s12 = sld [smem:[#allocation0]]
  $region62: #{decoder_rnn_forward.1} parent=0
    _
  %s14 = ssub.s32 1, %s12
  %s15 = scalar_select 0, %s14, %s12
  $region1: #{decoder_rnn_forward.1} parent=0
    #allocation2 [shape = 'u8[65536]{0}', space=vmem, size = 0x10000, scoped, tag = 'input window, operand 4, single buffered']
    #allocation3 [shape = 's32[1]{0}', space=sflag, size = 0x4, scoped, tag = 'scoped memory for decoder_rnn_forward.1']
    #allocation4 [shape = 's32[1]{0}', space=sflag, size = 0x4, scoped, tag = 'scoped memory for decoder_rnn_forward.1']
    #allocation5 [shape = 'u8[32768]{0}', space=vmem, size = 0x8000, scoped, tag = 'input window, operand 7, single buffered']
    #allocation6 [shape = 's32[1]{0}', space=sflag, size = 0x4, scoped, tag = 'scoped memory for decoder_rnn_forward.1']
    #allocation7 [shape = 'u8[4096]{0}', space=vmem, size = 0x1000, scoped, tag = 'output window, operand 0, single buffered']
    %16 = vsyncpa [#allocation3], 0
    %17 = vsyncpa [#allocation6], 0
    %18 = vsyncpa [#allocation4], 0
    // Predicated region
    $region2: #{decoder_rnn_forward.1} parent=1 // pred_check
      _
    $region3: #{decoder_rnn_forward.1} parent=1 // pred_check_branch
      %20 = sbr.rel (0) target = $region5
    $region4: #{decoder_rnn_forward.1} parent=1 // pred_region
      _
    $region5: #{decoder_rnn_forward.1} parent=1 // pred_fallthru
      _
    // Predicated region
    $region6: #{decoder_rnn_forward.1} parent=1 // pred_check
      _
    $region7: #{decoder_rnn_forward.1} parent=1 // pred_check_branch
      %22 = sbr.rel (0) target = $region9
    $region8: #{decoder_rnn_forward.1} parent=1 // pred_region
      _
    $region9: #{decoder_rnn_forward.1} parent=1 // pred_fallthru
      _
    // Predicated region
    $region10: #{decoder_rnn_forward.1} parent=1 // pred_check
      _
    $region11: #{decoder_rnn_forward.1} parent=1 // pred_check_branch
      %24 = sbr.rel (0) target = $region13
    $region12: #{decoder_rnn_forward.1} parent=1 // pred_region
      _
    $region13: #{decoder_rnn_forward.1} parent=1 // pred_fallthru
      _
    // Predicated region
    $region14: #{decoder_rnn_forward.1} parent=1 // pred_check
      _
    $region15: #{decoder_rnn_forward.1} parent=1 // pred_check_branch
      %26 = sbr.rel (0) target = $region17
    $region16: #{decoder_rnn_forward.1} parent=1 // pred_region
      _
    $region17: #{decoder_rnn_forward.1} parent=1 // pred_fallthru
      _
    // Predicated region
    $region18: #{decoder_rnn_forward.1} parent=1 // pred_check
      _
    $region19: #{decoder_rnn_forward.1} parent=1 // pred_check_branch
      %28 = sbr.rel (0) target = $region21
    $region20: #{decoder_rnn_forward.1} parent=1 // pred_region
      %30 = vsyncadd [#allocation3], 0
      %s31 = sshll.u32 %s4, 4
      %s32 = int_to_ptr.hbm [resolvable:$true] %s31
      %s33 = sshll.u32 [#allocation2], 4
      %s34 = int_to_ptr.vmem [resolvable:$true] %s33
      %39 = dma.hbm_to_vmem [thread:$0]  %s32, 2048, %s34, [#allocation3], 256, 256, 16
    $region21: #{decoder_rnn_forward.1} parent=1 // pred_fallthru
      _
    // Predicated region
    $region22: #{decoder_rnn_forward.1} parent=1 // pred_check
      _
    $region23: #{decoder_rnn_forward.1} parent=1 // pred_check_branch
      %41 = sbr.rel (0) target = $region25
    $region24: #{decoder_rnn_forward.1} parent=1 // pred_region
      _
    $region25: #{decoder_rnn_forward.1} parent=1 // pred_fallthru
      _
    // Predicated region
    $region26: #{decoder_rnn_forward.1} parent=1 // pred_check
      _
    $region27: #{decoder_rnn_forward.1} parent=1 // pred_check_branch
      %43 = sbr.rel (0) target = $region29
    $region28: #{decoder_rnn_forward.1} parent=1 // pred_region
      _
    $region29: #{decoder_rnn_forward.1} parent=1 // pred_fallthru
      _
    // Predicated region
    $region30: #{decoder_rnn_forward.1} parent=1 // pred_check
      _
    $region31: #{decoder_rnn_forward.1} parent=1 // pred_check_branch
      %45 = sbr.rel (0) target = $region33
    $region32: #{decoder_rnn_forward.1} parent=1 // pred_region
      %47 = vsyncadd [#allocation6], 0
      %s48 = sshll.u32 %s7, 4
      %s49 = int_to_ptr.hbm [resolvable:$true] %s48
      %s50 = sshll.u32 [#allocation5], 4
      %s51 = int_to_ptr.vmem [resolvable:$true] %s50
      %56 = dma.hbm_to_vmem [thread:$0]  %s49, 1024, %s51, [#allocation6], 128, 128, 8
    $region33: #{decoder_rnn_forward.1} parent=1 // pred_fallthru
      _
    // Predicated region
    $region34: #{decoder_rnn_forward.1} parent=1 // pred_check
      _
    $region35: #{decoder_rnn_forward.1} parent=1 // pred_check_branch
      %58 = sbr.rel (0) target = $region37
    $region36: #{decoder_rnn_forward.1} parent=1 // pred_region
      _
    $region37: #{decoder_rnn_forward.1} parent=1 // pred_fallthru
      _
    // Predicated region
    $region38: #{decoder_rnn_forward.1} parent=1 // pred_check
      _
    $region39: #{decoder_rnn_forward.1} parent=1 // pred_check_branch
      %60 = sbr.rel (0) target = $region41
    $region40: #{decoder_rnn_forward.1} parent=1 // pred_region
      %62 = dma.done [#allocation3], 2048
    $region41: #{decoder_rnn_forward.1} parent=1 // pred_fallthru
      _
    // Predicated region
    $region42: #{decoder_rnn_forward.1} parent=1 // pred_check
      _
    $region43: #{decoder_rnn_forward.1} parent=1 // pred_check_branch
      %64 = sbr.rel (0) target = $region45
    $region44: #{decoder_rnn_forward.1} parent=1 // pred_region
      %66 = dma.done [#allocation6], 1024
    $region45: #{decoder_rnn_forward.1} parent=1 // pred_fallthru
      _
    %v67 = vld [vmem:[%s0] sm:$0xff]
    %v68 = vlaneseq
    %v69 = vand.u32 %v68, 127
    %70 = vset.pattern.permute.xlu0 0
    %71 = vperm.xlu0 %70, %v67
    %v72 = vpop.permute.xlu0 %71
    %vm73 = vcmp.eq.s32.totalorder %v69, %v72
    %v74 = vsel %vm73, 1, 0
    %v75 = vcvt.s32.f32 %v74
    %v76 = vld [vmem:[%s1] sm:$0xff]
    %v77 = vld [vmem:[%s1 + $0x8] sm:$0xff]
    %v78 = vld [vmem:[%s1 + $0x10] sm:$0xff]
    %v79 = vld [vmem:[%s1 + $0x18] sm:$0xff]
    %v80 = vld [vmem:[%s1 + $0x20] sm:$0xff]
    %v81 = vld [vmem:[%s1 + $0x28] sm:$0xff]
    %v82 = vld [vmem:[%s1 + $0x30] sm:$0xff]
    %v83 = vld [vmem:[%s1 + $0x38] sm:$0xff]
    %vm84 = vcmask 523264
    %v86 = vsel %vm84, %v75, 0
    %88 = vmatpush.msra.mxu0 0.0
    %89 = vmatpush.msra.mxu0 0.0
    %90 = vmatpush.msra.mxu0 0.0
    %91 = vmatpush.msra.mxu0 0.0
    %92 = vmatpush.msra.mxu0 0.0
    %93 = vmatpush.msra.mxu0 0.0
    %94 = vmatpush.msra.mxu0 0.0
    %95 = vmatpush.msra.mxu0 0.0
    %96 = vmatpush.msra.mxu0 %v83
    %97 = vmatpush.msra.mxu0 %v82
    %98 = vmatpush.msra.mxu0 %v81
    %99 = vmatpush.msra.mxu0 %v80
    %100 = vmatpush.msra.mxu0 %v79
    %101 = vmatpush.msra.mxu0 %v78
    %102 = vmatpush.msra.mxu0 %v77
    %103 = vmatpush.msra.mxu0 %v76
    %104 = vmatmul.f32.gmra.mxu0 %v86
    %v105 = vpop.f32.mrf.mxu0
    %v106 = vadd.f32 0.0, %v105
    %107 = vdwg.mxu0
    %v108 = vmax.f32 %v106, 0.0
    %v109 = vld [vmem:[%s3] sm:$0xff]
    %v110 = vld [vmem:[%s3 + $0x8] sm:$0xff]
    %v111 = vld [vmem:[%s3 + $0x10] sm:$0xff]
    %v112 = vld [vmem:[%s3 + $0x18] sm:$0xff]
    %v113 = vld [vmem:[%s3 + $0x20] sm:$0xff]
    %v114 = vld [vmem:[%s3 + $0x28] sm:$0xff]
    %v115 = vld [vmem:[%s3 + $0x30] sm:$0xff]
    %v116 = vld [vmem:[%s3 + $0x38] sm:$0xff]
    %v117 = vld [vmem:[%s5] sm:$0x3]
    %v119 = vperm.slane %v117, 0
    %v120 = vperm.slane %v117, 1
    %vm123 = vcmask 261120
    %v125 = vsel %vm123, %v108, 0
    %127 = vmatpush.msra.mxu0 0.0
    %128 = vmatpush.msra.mxu0 0.0
    %129 = vmatpush.msra.mxu0 0.0
    %130 = vmatpush.msra.mxu0 0.0
    %131 = vmatpush.msra.mxu0 0.0
    %132 = vmatpush.msra.mxu0 0.0
    %133 = vmatpush.msra.mxu0 0.0
    %134 = vmatpush.msra.mxu0 0.0
    %135 = vmatpush.msra.mxu0 0.0
    %136 = vmatpush.msra.mxu0 0.0
    %137 = vmatpush.msra.mxu0 0.0
    %138 = vmatpush.msra.mxu0 0.0
    %139 = vmatpush.msra.mxu0 %v115
    %140 = vmatpush.msra.mxu0 %v113
    %141 = vmatpush.msra.mxu0 %v111
    %142 = vmatpush.msra.mxu0 %v109
    %143 = vmatmul.f32.gmra.mxu0 %v125
    %v144 = vpop.f32.mrf.mxu0
    %v145 = vadd.f32 %v119, %v144
    %146 = vdwg.mxu0
    %147 = vmatpush.msra.mxu0 0.0
    %148 = vmatpush.msra.mxu0 0.0
    %149 = vmatpush.msra.mxu0 0.0
    %150 = vmatpush.msra.mxu0 0.0
    %151 = vmatpush.msra.mxu0 0.0
    %152 = vmatpush.msra.mxu0 0.0
    %153 = vmatpush.msra.mxu0 0.0
    %154 = vmatpush.msra.mxu0 0.0
    %155 = vmatpush.msra.mxu0 0.0
    %156 = vmatpush.msra.mxu0 0.0
    %157 = vmatpush.msra.mxu0 0.0
    %158 = vmatpush.msra.mxu0 0.0
    %159 = vmatpush.msra.mxu0 %v116
    %160 = vmatpush.msra.mxu0 %v114
    %161 = vmatpush.msra.mxu0 %v112
    %162 = vmatpush.msra.mxu0 %v110
    %163 = vmatmul.f32.gmra.mxu0 %v125
    %v164 = vpop.f32.mrf.mxu0
    %v165 = vadd.f32 %v120, %v164
    %166 = vdwg.mxu0
    %v167 = vld [vmem:[#allocation2] sm:$0xff]
    %v168 = vld [vmem:[#allocation2 + $0x8] sm:$0xff]
    %v169 = vld [vmem:[#allocation2 + $0x10] sm:$0xff]
    %v170 = vld [vmem:[#allocation2 + $0x18] sm:$0xff]
    %v171 = vld [vmem:[#allocation2 + $0x20] sm:$0xff]
    %v172 = vld [vmem:[#allocation2 + $0x28] sm:$0xff]
    %v173 = vld [vmem:[#allocation2 + $0x30] sm:$0xff]
    %v174 = vld [vmem:[#allocation2 + $0x38] sm:$0xff]
    %v175 = vld [vmem:[#allocation2 + $0x40] sm:$0xff]
    %v176 = vld [vmem:[#allocation2 + $0x48] sm:$0xff]
    %v177 = vld [vmem:[#allocation2 + $0x50] sm:$0xff]
    %v178 = vld [vmem:[#allocation2 + $0x58] sm:$0xff]
    %v179 = vld [vmem:[#allocation2 + $0x60] sm:$0xff]
    %v180 = vld [vmem:[#allocation2 + $0x68] sm:$0xff]
    %v181 = vld [vmem:[#allocation2 + $0x70] sm:$0xff]
    %v182 = vld [vmem:[#allocation2 + $0x78] sm:$0xff]
    %v183 = vld [vmem:[%s6] sm:$0x1]
    %v184 = vld [vmem:[%s2] sm:$0x1]
    %v186 = vsel %vm84, %v184, 0
    %188 = vmatpush.msra.mxu0 0.0
    %189 = vmatpush.msra.mxu0 0.0
    %190 = vmatpush.msra.mxu0 0.0
    %191 = vmatpush.msra.mxu0 0.0
    %192 = vmatpush.msra.mxu0 0.0
    %193 = vmatpush.msra.mxu0 0.0
    %194 = vmatpush.msra.mxu0 0.0
    %195 = vmatpush.msra.mxu0 0.0
    %196 = vmatpush.msra.mxu0 %v181
    %197 = vmatpush.msra.mxu0 %v179
    %198 = vmatpush.msra.mxu0 %v177
    %199 = vmatpush.msra.mxu0 %v175
    %200 = vmatpush.msra.mxu0 %v173
    %201 = vmatpush.msra.mxu0 %v171
    %202 = vmatpush.msra.mxu0 %v169
    %203 = vmatpush.msra.mxu0 %v167
    %204 = vmatmul.f32.gmra.mxu0 %v186
    %v205 = vpop.f32.mrf.mxu0
    %v206 = vadd.f32 0.0, %v205
    %207 = vdwg.mxu0
    %208 = vmatpush.msra.mxu0 0.0
    %209 = vmatpush.msra.mxu0 0.0
    %210 = vmatpush.msra.mxu0 0.0
    %211 = vmatpush.msra.mxu0 0.0
    %212 = vmatpush.msra.mxu0 0.0
    %213 = vmatpush.msra.mxu0 0.0
    %214 = vmatpush.msra.mxu0 0.0
    %215 = vmatpush.msra.mxu0 0.0
    %216 = vmatpush.msra.mxu0 %v182
    %217 = vmatpush.msra.mxu0 %v180
    %218 = vmatpush.msra.mxu0 %v178
    %219 = vmatpush.msra.mxu0 %v176
    %220 = vmatpush.msra.mxu0 %v174
    %221 = vmatpush.msra.mxu0 %v172
    %222 = vmatpush.msra.mxu0 %v170
    %223 = vmatpush.msra.mxu0 %v168
    %224 = vmatmul.f32.gmra.mxu0 %v186
    %v225 = vpop.f32.mrf.mxu0
    %v226 = vadd.f32 0.0, %v225
    %227 = vdwg.mxu0
    %v228 = vadd.f32 %v145, %v206
    %v229 = vxor.u32 %v228, 2147483648
    %v230 = vmul.f32 %v229, 1.442695
    %v231 = vpow.pop %v230
    %v232 = vadd.f32 %v231, 1.0
    %v233 = vrcp.pop %v232
    %v234 = vmul.f32 %v232, %v233
    %v235 = vsub.f32 1.0, %v234
    %v236 = vmul.f32 %v233, %v235
    %v237 = vadd.f32 %v233, %v236
    %vm238 = vweird.f32 %v232
    %vm239 = vweird.f32 %v233
    %vm240 = vmor %vm238, %vm239
    %v241 = vsel %vm240, %v233, %v237
    %v242 = vand.u32 2147483647, %v232
    %vm243 = vcmp.eq.f32.partialorder %v242, 8.507059e+37
    %v244 = vand.u32 %v232, 2147483648
    %v245 = vor.u32 1.1754944e-38, %v244
    %v246 = vsel %vm243, %v245, %v241
    %v247 = vmul.f32 1.0, %v246
    %v248 = vadd.f32 %v226, %v183
    %v249 = vmul.f32 %v247, %v248
    %v250 = vadd.f32 %v165, %v249
    %v251 = vtanh.pop %v250
    %v252 = vsub.f32 1.0, %v247
    %254 = vrot.lane.b32.xlu0 %v251, 64
    %v255 = vpop.permute.xlu0 %254
    %v257 = vmul.f32 %v252, %v255
    %v258 = vperm.slane %v184, 0
    %259 = vrot.lane.b32.xlu0 %v258, 64
    %v260 = vpop.permute.xlu0 %259
    %v262 = vmul.f32 %v247, %v260
    %v263 = vadd.f32 %v257, %v262
    %265 = vrot.lane.b32.xlu0 %v263, 64
    %v266 = vpop.permute.xlu0 %265
    %v267 = vsel %vm84, %v266, 0
    %269 = vmatpush.msra.mxu0 0.0
    %270 = vmatpush.msra.mxu0 0.0
    %271 = vmatpush.msra.mxu0 0.0
    %272 = vmatpush.msra.mxu0 0.0
    %273 = vmatpush.msra.mxu0 0.0
    %274 = vmatpush.msra.mxu0 0.0
    %275 = vmatpush.msra.mxu0 0.0
    %276 = vmatpush.msra.mxu0 0.0
    %277 = vmatpush.msra.mxu0 %v181
    %278 = vmatpush.msra.mxu0 %v179
    %279 = vmatpush.msra.mxu0 %v177
    %280 = vmatpush.msra.mxu0 %v175
    %281 = vmatpush.msra.mxu0 %v173
    %282 = vmatpush.msra.mxu0 %v171
    %283 = vmatpush.msra.mxu0 %v169
    %284 = vmatpush.msra.mxu0 %v167
    %285 = vmatmul.f32.gmra.mxu0 %v267
    %v286 = vpop.f32.mrf.mxu0
    %v287 = vadd.f32 0.0, %v286
    %288 = vdwg.mxu0
    %289 = vmatpush.msra.mxu0 0.0
    %290 = vmatpush.msra.mxu0 0.0
    %291 = vmatpush.msra.mxu0 0.0
    %292 = vmatpush.msra.mxu0 0.0
    %293 = vmatpush.msra.mxu0 0.0
    %294 = vmatpush.msra.mxu0 0.0
    %295 = vmatpush.msra.mxu0 0.0
    %296 = vmatpush.msra.mxu0 0.0
    %297 = vmatpush.msra.mxu0 %v182
    %298 = vmatpush.msra.mxu0 %v180
    %299 = vmatpush.msra.mxu0 %v178
    %300 = vmatpush.msra.mxu0 %v176
    %301 = vmatpush.msra.mxu0 %v174
    %302 = vmatpush.msra.mxu0 %v172
    %303 = vmatpush.msra.mxu0 %v170
    %304 = vmatpush.msra.mxu0 %v168
    %305 = vmatmul.f32.gmra.mxu0 %v267
    %v306 = vpop.f32.mrf.mxu0
    %v307 = vadd.f32 0.0, %v306
    %308 = vdwg.mxu0
    %v310 = vrot.slane %v287, 7
    %v312 = vadd.f32 %v145, %v310
    %v313 = vxor.u32 %v312, 2147483648
    %v314 = vmul.f32 %v313, 1.442695
    %v315 = vpow.pop %v314
    %v316 = vadd.f32 %v315, 1.0
    %v317 = vrcp.pop %v316
    %v318 = vmul.f32 %v316, %v317
    %v319 = vsub.f32 1.0, %v318
    %v320 = vmul.f32 %v317, %v319
    %v321 = vadd.f32 %v317, %v320
    %vm322 = vweird.f32 %v316
    %vm323 = vweird.f32 %v317
    %vm324 = vmor %vm322, %vm323
    %v325 = vsel %vm324, %v317, %v321
    %v326 = vand.u32 2147483647, %v316
    %vm327 = vcmp.eq.f32.partialorder %v326, 8.507059e+37
    %v328 = vand.u32 %v316, 2147483648
    %v329 = vor.u32 1.1754944e-38, %v328
    %v330 = vsel %vm327, %v329, %v325
    %v331 = vmul.f32 1.0, %v330
    %v332 = vadd.f32 %v307, %v183
    %v334 = vrot.slane %v332, 7
    %v336 = vmul.f32 %v331, %v334
    %v337 = vadd.f32 %v165, %v336
    %v338 = vtanh.pop %v337
    %v339 = vsub.f32 1.0, %v331
    %341 = vrot.lane.b32.xlu0 %v338, 64
    %v342 = vpop.permute.xlu0 %341
    %v344 = vmul.f32 %v339, %v342
    %v345 = vrot.slane %v263, 7
    %v347 = vmul.f32 %v331, %v345
    %v348 = vadd.f32 %v344, %v347
    %v350 = vrot.slane %v348, 1
    %351 = vrot.lane.b32.xlu0 %v350, 64
    %v352 = vpop.permute.xlu0 %351
    %v353 = vsel %vm84, %v352, 0
    %355 = vmatpush.msra.mxu0 0.0
    %356 = vmatpush.msra.mxu0 0.0
    %357 = vmatpush.msra.mxu0 0.0
    %358 = vmatpush.msra.mxu0 0.0
    %359 = vmatpush.msra.mxu0 0.0
    %360 = vmatpush.msra.mxu0 0.0
    %361 = vmatpush.msra.mxu0 0.0
    %362 = vmatpush.msra.mxu0 0.0
    %363 = vmatpush.msra.mxu0 %v181
    %364 = vmatpush.msra.mxu0 %v179
    %365 = vmatpush.msra.mxu0 %v177
    %366 = vmatpush.msra.mxu0 %v175
    %367 = vmatpush.msra.mxu0 %v173
    %368 = vmatpush.msra.mxu0 %v171
    %369 = vmatpush.msra.mxu0 %v169
    %370 = vmatpush.msra.mxu0 %v167
    %371 = vmatmul.f32.gmra.mxu0 %v353
    %v372 = vpop.f32.mrf.mxu0
    %v373 = vadd.f32 0.0, %v372
    %374 = vdwg.mxu0
    %375 = vmatpush.msra.mxu0 0.0
    %376 = vmatpush.msra.mxu0 0.0
    %377 = vmatpush.msra.mxu0 0.0
    %378 = vmatpush.msra.mxu0 0.0
    %379 = vmatpush.msra.mxu0 0.0
    %380 = vmatpush.msra.mxu0 0.0
    %381 = vmatpush.msra.mxu0 0.0
    %382 = vmatpush.msra.mxu0 0.0
    %383 = vmatpush.msra.mxu0 %v182
    %384 = vmatpush.msra.mxu0 %v180
    %385 = vmatpush.msra.mxu0 %v178
    %386 = vmatpush.msra.mxu0 %v176
    %387 = vmatpush.msra.mxu0 %v174
    %388 = vmatpush.msra.mxu0 %v172
    %389 = vmatpush.msra.mxu0 %v170
    %390 = vmatpush.msra.mxu0 %v168
    %391 = vmatmul.f32.gmra.mxu0 %v353
    %v392 = vpop.f32.mrf.mxu0
    %v393 = vadd.f32 0.0, %v392
    %394 = vdwg.mxu0
    %v396 = vrot.slane %v373, 6
    %v398 = vadd.f32 %v145, %v396
    %v399 = vxor.u32 %v398, 2147483648
    %v400 = vmul.f32 %v399, 1.442695
    %v401 = vpow.pop %v400
    %v402 = vadd.f32 %v401, 1.0
    %v403 = vrcp.pop %v402
    %v404 = vmul.f32 %v402, %v403
    %v405 = vsub.f32 1.0, %v404
    %v406 = vmul.f32 %v403, %v405
    %v407 = vadd.f32 %v403, %v406
    %vm408 = vweird.f32 %v402
    %vm409 = vweird.f32 %v403
    %vm410 = vmor %vm408, %vm409
    %v411 = vsel %vm410, %v403, %v407
    %v412 = vand.u32 2147483647, %v402
    %vm413 = vcmp.eq.f32.partialorder %v412, 8.507059e+37
    %v414 = vand.u32 %v402, 2147483648
    %v415 = vor.u32 1.1754944e-38, %v414
    %v416 = vsel %vm413, %v415, %v411
    %v417 = vmul.f32 1.0, %v416
    %v418 = vadd.f32 %v393, %v183
    %v420 = vrot.slane %v418, 6
    %v422 = vmul.f32 %v417, %v420
    %v423 = vadd.f32 %v165, %v422
    %v424 = vtanh.pop %v423
    %v425 = vsub.f32 1.0, %v417
    %427 = vrot.lane.b32.xlu0 %v424, 64
    %v428 = vpop.permute.xlu0 %427
    %v430 = vmul.f32 %v425, %v428
    %v431 = vrot.slane %v348, 7
    %v433 = vmul.f32 %v417, %v431
    %v434 = vadd.f32 %v430, %v433
    %v436 = vrot.slane %v434, 2
    %437 = vrot.lane.b32.xlu0 %v436, 64
    %v438 = vpop.permute.xlu0 %437
    %v439 = vsel %vm84, %v438, 0
    %441 = vmatpush.msra.mxu0 0.0
    %442 = vmatpush.msra.mxu0 0.0
    %443 = vmatpush.msra.mxu0 0.0
    %444 = vmatpush.msra.mxu0 0.0
    %445 = vmatpush.msra.mxu0 0.0
    %446 = vmatpush.msra.mxu0 0.0
    %447 = vmatpush.msra.mxu0 0.0
    %448 = vmatpush.msra.mxu0 0.0
    %449 = vmatpush.msra.mxu0 %v181
    %450 = vmatpush.msra.mxu0 %v179
    %451 = vmatpush.msra.mxu0 %v177
    %452 = vmatpush.msra.mxu0 %v175
    %453 = vmatpush.msra.mxu0 %v173
    %454 = vmatpush.msra.mxu0 %v171
    %455 = vmatpush.msra.mxu0 %v169
    %456 = vmatpush.msra.mxu0 %v167
    %457 = vmatmul.f32.gmra.mxu0 %v439
    %v458 = vpop.f32.mrf.mxu0
    %v459 = vadd.f32 0.0, %v458
    %460 = vdwg.mxu0
    %461 = vmatpush.msra.mxu0 0.0
    %462 = vmatpush.msra.mxu0 0.0
    %463 = vmatpush.msra.mxu0 0.0
    %464 = vmatpush.msra.mxu0 0.0
    %465 = vmatpush.msra.mxu0 0.0
    %466 = vmatpush.msra.mxu0 0.0
    %467 = vmatpush.msra.mxu0 0.0
    %468 = vmatpush.msra.mxu0 0.0
    %469 = vmatpush.msra.mxu0 %v182
    %470 = vmatpush.msra.mxu0 %v180
    %471 = vmatpush.msra.mxu0 %v178
    %472 = vmatpush.msra.mxu0 %v176
    %473 = vmatpush.msra.mxu0 %v174
    %474 = vmatpush.msra.mxu0 %v172
    %475 = vmatpush.msra.mxu0 %v170
    %476 = vmatpush.msra.mxu0 %v168
    %477 = vmatmul.f32.gmra.mxu0 %v439
    %v478 = vpop.f32.mrf.mxu0
    %v479 = vadd.f32 0.0, %v478
    %480 = vdwg.mxu0
    %v482 = vrot.slane %v459, 5
    %v484 = vadd.f32 %v145, %v482
    %v485 = vxor.u32 %v484, 2147483648
    %v486 = vmul.f32 %v485, 1.442695
    %v487 = vpow.pop %v486
    %v488 = vadd.f32 %v487, 1.0
    %v489 = vrcp.pop %v488
    %v490 = vmul.f32 %v488, %v489
    %v491 = vsub.f32 1.0, %v490
    %v492 = vmul.f32 %v489, %v491
    %v493 = vadd.f32 %v489, %v492
    %vm494 = vweird.f32 %v488
    %vm495 = vweird.f32 %v489
    %vm496 = vmor %vm494, %vm495
    %v497 = vsel %vm496, %v489, %v493
    %v498 = vand.u32 2147483647, %v488
    %vm499 = vcmp.eq.f32.partialorder %v498, 8.507059e+37
    %v500 = vand.u32 %v488, 2147483648
    %v501 = vor.u32 1.1754944e-38, %v500
    %v502 = vsel %vm499, %v501, %v497
    %v503 = vmul.f32 1.0, %v502
    %v504 = vadd.f32 %v479, %v183
    %v506 = vrot.slane %v504, 5
    %v508 = vmul.f32 %v503, %v506
    %v509 = vadd.f32 %v165, %v508
    %v510 = vtanh.pop %v509
    %v511 = vsub.f32 1.0, %v503
    %513 = vrot.lane.b32.xlu0 %v510, 64
    %v514 = vpop.permute.xlu0 %513
    %v516 = vmul.f32 %v511, %v514
    %v517 = vrot.slane %v434, 7
    %v519 = vmul.f32 %v503, %v517
    %v520 = vadd.f32 %v516, %v519
    %v522 = vrot.slane %v520, 3
    %523 = vrot.lane.b32.xlu0 %v522, 64
    %v524 = vpop.permute.xlu0 %523
    %v525 = vsel %vm84, %v524, 0
    %527 = vmatpush.msra.mxu0 0.0
    %528 = vmatpush.msra.mxu0 0.0
    %529 = vmatpush.msra.mxu0 0.0
    %530 = vmatpush.msra.mxu0 0.0
    %531 = vmatpush.msra.mxu0 0.0
    %532 = vmatpush.msra.mxu0 0.0
    %533 = vmatpush.msra.mxu0 0.0
    %534 = vmatpush.msra.mxu0 0.0
    %535 = vmatpush.msra.mxu0 %v181
    %536 = vmatpush.msra.mxu0 %v179
    %537 = vmatpush.msra.mxu0 %v177
    %538 = vmatpush.msra.mxu0 %v175
    %539 = vmatpush.msra.mxu0 %v173
    %540 = vmatpush.msra.mxu0 %v171
    %541 = vmatpush.msra.mxu0 %v169
    %542 = vmatpush.msra.mxu0 %v167
    %543 = vmatmul.f32.gmra.mxu0 %v525
    %v544 = vpop.f32.mrf.mxu0
    %v545 = vadd.f32 0.0, %v544
    %546 = vdwg.mxu0
    %547 = vmatpush.msra.mxu0 0.0
    %548 = vmatpush.msra.mxu0 0.0
    %549 = vmatpush.msra.mxu0 0.0
    %550 = vmatpush.msra.mxu0 0.0
    %551 = vmatpush.msra.mxu0 0.0
    %552 = vmatpush.msra.mxu0 0.0
    %553 = vmatpush.msra.mxu0 0.0
    %554 = vmatpush.msra.mxu0 0.0
    %555 = vmatpush.msra.mxu0 %v182
    %556 = vmatpush.msra.mxu0 %v180
    %557 = vmatpush.msra.mxu0 %v178
    %558 = vmatpush.msra.mxu0 %v176
    %559 = vmatpush.msra.mxu0 %v174
    %560 = vmatpush.msra.mxu0 %v172
    %561 = vmatpush.msra.mxu0 %v170
    %562 = vmatpush.msra.mxu0 %v168
    %563 = vmatmul.f32.gmra.mxu0 %v525
    %v564 = vpop.f32.mrf.mxu0
    %v565 = vadd.f32 0.0, %v564
    %566 = vdwg.mxu0
    %v568 = vrot.slane %v545, 4
    %v570 = vadd.f32 %v145, %v568
    %v571 = vxor.u32 %v570, 2147483648
    %v572 = vmul.f32 %v571, 1.442695
    %v573 = vpow.pop %v572
    %v574 = vadd.f32 %v573, 1.0
    %v575 = vrcp.pop %v574
    %v576 = vmul.f32 %v574, %v575
    %v577 = vsub.f32 1.0, %v576
    %v578 = vmul.f32 %v575, %v577
    %v579 = vadd.f32 %v575, %v578
    %vm580 = vweird.f32 %v574
    %vm581 = vweird.f32 %v575
    %vm582 = vmor %vm580, %vm581
    %v583 = vsel %vm582, %v575, %v579
    %v584 = vand.u32 2147483647, %v574
    %vm585 = vcmp.eq.f32.partialorder %v584, 8.507059e+37
    %v586 = vand.u32 %v574, 2147483648
    %v587 = vor.u32 1.1754944e-38, %v586
    %v588 = vsel %vm585, %v587, %v583
    %v589 = vmul.f32 1.0, %v588
    %v590 = vadd.f32 %v565, %v183
    %v592 = vrot.slane %v590, 4
    %v594 = vmul.f32 %v589, %v592
    %v595 = vadd.f32 %v165, %v594
    %v596 = vtanh.pop %v595
    %v597 = vsub.f32 1.0, %v589
    %599 = vrot.lane.b32.xlu0 %v596, 64
    %v600 = vpop.permute.xlu0 %599
    %v602 = vmul.f32 %v597, %v600
    %v603 = vrot.slane %v520, 7
    %v605 = vmul.f32 %v589, %v603
    %v606 = vadd.f32 %v602, %v605
    %v608 = vrot.slane %v606, 4
    %609 = vrot.lane.b32.xlu0 %v608, 64
    %v610 = vpop.permute.xlu0 %609
    %v611 = vsel %vm84, %v610, 0
    %613 = vmatpush.msra.mxu0 0.0
    %614 = vmatpush.msra.mxu0 0.0
    %615 = vmatpush.msra.mxu0 0.0
    %616 = vmatpush.msra.mxu0 0.0
    %617 = vmatpush.msra.mxu0 0.0
    %618 = vmatpush.msra.mxu0 0.0
    %619 = vmatpush.msra.mxu0 0.0
    %620 = vmatpush.msra.mxu0 0.0
    %621 = vmatpush.msra.mxu0 %v181
    %622 = vmatpush.msra.mxu0 %v179
    %623 = vmatpush.msra.mxu0 %v177
    %624 = vmatpush.msra.mxu0 %v175
    %625 = vmatpush.msra.mxu0 %v173
    %626 = vmatpush.msra.mxu0 %v171
    %627 = vmatpush.msra.mxu0 %v169
    %628 = vmatpush.msra.mxu0 %v167
    %629 = vmatmul.f32.gmra.mxu0 %v611
    %v630 = vpop.f32.mrf.mxu0
    %v631 = vadd.f32 0.0, %v630
    %632 = vdwg.mxu0
    %633 = vmatpush.msra.mxu0 0.0
    %634 = vmatpush.msra.mxu0 0.0
    %635 = vmatpush.msra.mxu0 0.0
    %636 = vmatpush.msra.mxu0 0.0
    %637 = vmatpush.msra.mxu0 0.0
    %638 = vmatpush.msra.mxu0 0.0
    %639 = vmatpush.msra.mxu0 0.0
    %640 = vmatpush.msra.mxu0 0.0
    %641 = vmatpush.msra.mxu0 %v182
    %642 = vmatpush.msra.mxu0 %v180
    %643 = vmatpush.msra.mxu0 %v178
    %644 = vmatpush.msra.mxu0 %v176
    %645 = vmatpush.msra.mxu0 %v174
    %646 = vmatpush.msra.mxu0 %v172
    %647 = vmatpush.msra.mxu0 %v170
    %648 = vmatpush.msra.mxu0 %v168
    %649 = vmatmul.f32.gmra.mxu0 %v611
    %v650 = vpop.f32.mrf.mxu0
    %v651 = vadd.f32 0.0, %v650
    %652 = vdwg.mxu0
    %v654 = vrot.slane %v631, 3
    %v656 = vadd.f32 %v145, %v654
    %v657 = vxor.u32 %v656, 2147483648
    %v658 = vmul.f32 %v657, 1.442695
    %v659 = vpow.pop %v658
    %v660 = vadd.f32 %v659, 1.0
    %v661 = vrcp.pop %v660
    %v662 = vmul.f32 %v660, %v661
    %v663 = vsub.f32 1.0, %v662
    %v664 = vmul.f32 %v661, %v663
    %v665 = vadd.f32 %v661, %v664
    %vm666 = vweird.f32 %v660
    %vm667 = vweird.f32 %v661
    %vm668 = vmor %vm666, %vm667
    %v669 = vsel %vm668, %v661, %v665
    %v670 = vand.u32 2147483647, %v660
    %vm671 = vcmp.eq.f32.partialorder %v670, 8.507059e+37
    %v672 = vand.u32 %v660, 2147483648
    %v673 = vor.u32 1.1754944e-38, %v672
    %v674 = vsel %vm671, %v673, %v669
    %v675 = vmul.f32 1.0, %v674
    %v676 = vadd.f32 %v651, %v183
    %v678 = vrot.slane %v676, 3
    %v680 = vmul.f32 %v675, %v678
    %v681 = vadd.f32 %v165, %v680
    %v682 = vtanh.pop %v681
    %v683 = vsub.f32 1.0, %v675
    %685 = vrot.lane.b32.xlu0 %v682, 64
    %v686 = vpop.permute.xlu0 %685
    %v688 = vmul.f32 %v683, %v686
    %v689 = vrot.slane %v606, 7
    %v691 = vmul.f32 %v675, %v689
    %v692 = vadd.f32 %v688, %v691
    %v694 = vrot.slane %v692, 5
    %695 = vrot.lane.b32.xlu0 %v694, 64
    %v696 = vpop.permute.xlu0 %695
    %v697 = vsel %vm84, %v696, 0
    %699 = vmatpush.msra.mxu0 0.0
    %700 = vmatpush.msra.mxu0 0.0
    %701 = vmatpush.msra.mxu0 0.0
    %702 = vmatpush.msra.mxu0 0.0
    %703 = vmatpush.msra.mxu0 0.0
    %704 = vmatpush.msra.mxu0 0.0
    %705 = vmatpush.msra.mxu0 0.0
    %706 = vmatpush.msra.mxu0 0.0
    %707 = vmatpush.msra.mxu0 %v181
    %708 = vmatpush.msra.mxu0 %v179
    %709 = vmatpush.msra.mxu0 %v177
    %710 = vmatpush.msra.mxu0 %v175
    %711 = vmatpush.msra.mxu0 %v173
    %712 = vmatpush.msra.mxu0 %v171
    %713 = vmatpush.msra.mxu0 %v169
    %714 = vmatpush.msra.mxu0 %v167
    %715 = vmatmul.f32.gmra.mxu0 %v697
    %v716 = vpop.f32.mrf.mxu0
    %v717 = vadd.f32 0.0, %v716
    %718 = vdwg.mxu0
    %719 = vmatpush.msra.mxu0 0.0
    %720 = vmatpush.msra.mxu0 0.0
    %721 = vmatpush.msra.mxu0 0.0
    %722 = vmatpush.msra.mxu0 0.0
    %723 = vmatpush.msra.mxu0 0.0
    %724 = vmatpush.msra.mxu0 0.0
    %725 = vmatpush.msra.mxu0 0.0
    %726 = vmatpush.msra.mxu0 0.0
    %727 = vmatpush.msra.mxu0 %v182
    %728 = vmatpush.msra.mxu0 %v180
    %729 = vmatpush.msra.mxu0 %v178
    %730 = vmatpush.msra.mxu0 %v176
    %731 = vmatpush.msra.mxu0 %v174
    %732 = vmatpush.msra.mxu0 %v172
    %733 = vmatpush.msra.mxu0 %v170
    %734 = vmatpush.msra.mxu0 %v168
    %735 = vmatmul.f32.gmra.mxu0 %v697
    %v736 = vpop.f32.mrf.mxu0
    %v737 = vadd.f32 0.0, %v736
    %738 = vdwg.mxu0
    %v740 = vrot.slane %v717, 2
    %v742 = vadd.f32 %v145, %v740
    %v743 = vxor.u32 %v742, 2147483648
    %v744 = vmul.f32 %v743, 1.442695
    %v745 = vpow.pop %v744
    %v746 = vadd.f32 %v745, 1.0
    %v747 = vrcp.pop %v746
    %v748 = vmul.f32 %v746, %v747
    %v749 = vsub.f32 1.0, %v748
    %v750 = vmul.f32 %v747, %v749
    %v751 = vadd.f32 %v747, %v750
    %vm752 = vweird.f32 %v746
    %vm753 = vweird.f32 %v747
    %vm754 = vmor %vm752, %vm753
    %v755 = vsel %vm754, %v747, %v751
    %v756 = vand.u32 2147483647, %v746
    %vm757 = vcmp.eq.f32.partialorder %v756, 8.507059e+37
    %v758 = vand.u32 %v746, 2147483648
    %v759 = vor.u32 1.1754944e-38, %v758
    %v760 = vsel %vm757, %v759, %v755
    %v761 = vmul.f32 1.0, %v760
    %v762 = vadd.f32 %v737, %v183
    %v764 = vrot.slane %v762, 2
    %v766 = vmul.f32 %v761, %v764
    %v767 = vadd.f32 %v165, %v766
    %v768 = vtanh.pop %v767
    %v769 = vsub.f32 1.0, %v761
    %771 = vrot.lane.b32.xlu0 %v768, 64
    %v772 = vpop.permute.xlu0 %771
    %v774 = vmul.f32 %v769, %v772
    %v775 = vrot.slane %v692, 7
    %v777 = vmul.f32 %v761, %v775
    %v778 = vadd.f32 %v774, %v777
    %v780 = vrot.slane %v778, 6
    %781 = vrot.lane.b32.xlu0 %v780, 64
    %v782 = vpop.permute.xlu0 %781
    %v783 = vsel %vm84, %v782, 0
    %785 = vmatpush.msra.mxu0 0.0
    %786 = vmatpush.msra.mxu0 0.0
    %787 = vmatpush.msra.mxu0 0.0
    %788 = vmatpush.msra.mxu0 0.0
    %789 = vmatpush.msra.mxu0 0.0
    %790 = vmatpush.msra.mxu0 0.0
    %791 = vmatpush.msra.mxu0 0.0
    %792 = vmatpush.msra.mxu0 0.0
    %793 = vmatpush.msra.mxu0 %v181
    %794 = vmatpush.msra.mxu0 %v179
    %795 = vmatpush.msra.mxu0 %v177
    %796 = vmatpush.msra.mxu0 %v175
    %797 = vmatpush.msra.mxu0 %v173
    %798 = vmatpush.msra.mxu0 %v171
    %799 = vmatpush.msra.mxu0 %v169
    %800 = vmatpush.msra.mxu0 %v167
    %801 = vmatmul.f32.gmra.mxu0 %v783
    %v802 = vpop.f32.mrf.mxu0
    %v803 = vadd.f32 0.0, %v802
    %804 = vdwg.mxu0
    %805 = vmatpush.msra.mxu0 0.0
    %806 = vmatpush.msra.mxu0 0.0
    %807 = vmatpush.msra.mxu0 0.0
    %808 = vmatpush.msra.mxu0 0.0
    %809 = vmatpush.msra.mxu0 0.0
    %810 = vmatpush.msra.mxu0 0.0
    %811 = vmatpush.msra.mxu0 0.0
    %812 = vmatpush.msra.mxu0 0.0
    %813 = vmatpush.msra.mxu0 %v182
    %814 = vmatpush.msra.mxu0 %v180
    %815 = vmatpush.msra.mxu0 %v178
    %816 = vmatpush.msra.mxu0 %v176
    %817 = vmatpush.msra.mxu0 %v174
    %818 = vmatpush.msra.mxu0 %v172
    %819 = vmatpush.msra.mxu0 %v170
    %820 = vmatpush.msra.mxu0 %v168
    %821 = vmatmul.f32.gmra.mxu0 %v783
    %v822 = vpop.f32.mrf.mxu0
    %v823 = vadd.f32 0.0, %v822
    %824 = vdwg.mxu0
    %v826 = vrot.slane %v803, 1
    %v828 = vadd.f32 %v145, %v826
    %v829 = vxor.u32 %v828, 2147483648
    %v830 = vmul.f32 %v829, 1.442695
    %v831 = vpow.pop %v830
    %v832 = vadd.f32 %v831, 1.0
    %v833 = vrcp.pop %v832
    %v834 = vmul.f32 %v832, %v833
    %v835 = vsub.f32 1.0, %v834
    %v836 = vmul.f32 %v833, %v835
    %v837 = vadd.f32 %v833, %v836
    %vm838 = vweird.f32 %v832
    %vm839 = vweird.f32 %v833
    %vm840 = vmor %vm838, %vm839
    %v841 = vsel %vm840, %v833, %v837
    %v842 = vand.u32 2147483647, %v832
    %vm843 = vcmp.eq.f32.partialorder %v842, 8.507059e+37
    %v844 = vand.u32 %v832, 2147483648
    %v845 = vor.u32 1.1754944e-38, %v844
    %v846 = vsel %vm843, %v845, %v841
    %v847 = vmul.f32 1.0, %v846
    %v848 = vadd.f32 %v823, %v183
    %v850 = vrot.slane %v848, 1
    %v852 = vmul.f32 %v847, %v850
    %v853 = vadd.f32 %v165, %v852
    %v854 = vtanh.pop %v853
    %v855 = vsub.f32 1.0, %v847
    %857 = vrot.lane.b32.xlu0 %v854, 64
    %v858 = vpop.permute.xlu0 %857
    %v860 = vmul.f32 %v855, %v858
    %v861 = vrot.slane %v778, 7
    %v863 = vmul.f32 %v847, %v861
    %v864 = vadd.f32 %v860, %v863
    %vm865 = vcmask 1040384
    %v866 = vsel %vm865, %v263, %v348
    %vm867 = vcmask 1041408
    %v868 = vsel %vm867, %v866, %v434
    %vm869 = vcmask 1042432
    %v870 = vsel %vm869, %v868, %v520
    %vm871 = vcmask 1043456
    %v872 = vsel %vm871, %v870, %v606
    %vm873 = vcmask 1044480
    %v874 = vsel %vm873, %v872, %v692
    %vm875 = vcmask 1045504
    %v876 = vsel %vm875, %v874, %v778
    %vm877 = vcmask 1046528
    %v878 = vsel %vm877, %v876, %v864
    %v879 = vld [vmem:[#allocation5] sm:$0xff]
    %v880 = vld [vmem:[#allocation5 + $0x8] sm:$0xff]
    %v881 = vld [vmem:[#allocation5 + $0x10] sm:$0xff]
    %v882 = vld [vmem:[#allocation5 + $0x18] sm:$0xff]
    %v883 = vld [vmem:[#allocation5 + $0x20] sm:$0xff]
    %v884 = vld [vmem:[#allocation5 + $0x28] sm:$0xff]
    %v885 = vld [vmem:[#allocation5 + $0x30] sm:$0xff]
    %v886 = vld [vmem:[#allocation5 + $0x38] sm:$0xff]
    %v887 = vld [vmem:[%s8] sm:$0x1]
    %v889 = vperm.slane %v887, 0
    %892 = vrot.lane.b32.xlu0 %v878, 64
    %v893 = vpop.permute.xlu0 %892
    %v894 = vsel %vm84, %v893, 0
    %896 = vmatpush.msra.mxu0 0.0
    %897 = vmatpush.msra.mxu0 0.0
    %898 = vmatpush.msra.mxu0 0.0
    %899 = vmatpush.msra.mxu0 0.0
    %900 = vmatpush.msra.mxu0 0.0
    %901 = vmatpush.msra.mxu0 0.0
    %902 = vmatpush.msra.mxu0 0.0
    %903 = vmatpush.msra.mxu0 0.0
    %904 = vmatpush.msra.mxu0 %v886
    %905 = vmatpush.msra.mxu0 %v885
    %906 = vmatpush.msra.mxu0 %v884
    %907 = vmatpush.msra.mxu0 %v883
    %908 = vmatpush.msra.mxu0 %v882
    %909 = vmatpush.msra.mxu0 %v881
    %910 = vmatpush.msra.mxu0 %v880
    %911 = vmatpush.msra.mxu0 %v879
    %912 = vmatmul.f32.gmra.mxu0 %v894
    %v913 = vpop.f32.mrf.mxu0
    %v914 = vadd.f32 %v889, %v913
    %915 = vdwg.mxu0
    %v916 = vsel %vm84, %v914, -inf
    %917 = vmax.xlane.f32.xlu0 %v916
    %v918 = vpop.xlane.xlu0 %917
    %v919 = vsub.f32 %v914, %v918
    %v920 = vmul.f32 %v919, 1.442695
    %v921 = vpow.pop %v920
    %v922 = vsel %vm84, %v921, 0.0
    %923 = vadd.xlane.f32.xlu0 %v922
    %v924 = vpop.xlane.xlu0 %923
    %v925 = vlog2.pop %v924
    %v926 = vmul.f32 %v925, 0.6931472
    %v927 = vsub.f32 %v919, %v926
    %928 = vst.msk [vmem:[#allocation7] sm:$0xff] %vm84, %v927
    %930 = vrot.lane.b32.xlu0 %v864, 64
    %v931 = vpop.permute.xlu0 %930
    %vm933 = vcmask 523271
    %934 = vst.msk [vmem:[%s10 - $0x7] sm:$0x80] %vm933, %v931
    // Predicated region
    $region46: #{decoder_rnn_forward.1} parent=1 // pred_check
      _
    $region47: #{decoder_rnn_forward.1} parent=1 // pred_check_branch
      %936 = sbr.rel (0) target = $region49
    $region48: #{decoder_rnn_forward.1} parent=1 // pred_region
      %938 = vsyncadd [#allocation4], 0
      %s940 = sshll.u32 [#allocation7], 4
      %s941 = int_to_ptr.vmem [resolvable:$true] %s940
      %s942 = sshll.u32 %s9, 4
      %s943 = int_to_ptr.hbm [resolvable:$true] %s942
      %945 = dma.vmem_to_hbm [thread:$0]  %s941, 128, %s943, [#allocation4]
    $region49: #{decoder_rnn_forward.1} parent=1 // pred_fallthru
      _
    // Predicated region
    $region50: #{decoder_rnn_forward.1} parent=1 // pred_check
      _
    $region51: #{decoder_rnn_forward.1} parent=1 // pred_check_branch
      %947 = sbr.rel (0) target = $region53
    $region52: #{decoder_rnn_forward.1} parent=1 // pred_region
      _
    $region53: #{decoder_rnn_forward.1} parent=1 // pred_fallthru
      _
    // Predicated region
    $region54: #{decoder_rnn_forward.1} parent=1 // pred_check
      _
    $region55: #{decoder_rnn_forward.1} parent=1 // pred_check_branch
      %949 = sbr.rel (0) target = $region57
    $region56: #{decoder_rnn_forward.1} parent=1 // pred_region
      %951 = dma.done [#allocation4], 128
    $region57: #{decoder_rnn_forward.1} parent=1 // pred_fallthru
      _
    // Predicated region
    $region58: #{decoder_rnn_forward.1} parent=1 // pred_check
      _
    $region59: #{decoder_rnn_forward.1} parent=1 // pred_check_branch
      %953 = sbr.rel (0) target = $region61
    $region60: #{decoder_rnn_forward.1} parent=1 // pred_region
      _
    $region61: #{decoder_rnn_forward.1} parent=1 // pred_fallthru
      _
    %954 = vsyncpa [#allocation3], 1
    %955 = vsyncpa [#allocation6], 1
    %956 = vsyncpa [#allocation4], 1

</llo_original>
